<compile_context>
chip_gen: v7x
topology: tpu7x:2x2x1
jax: 0.10.0
libtpu: 0.0.40
codegen_flags: <defaults>
</compile_context>

<pallas_src>
import jax
import jax.numpy as jnp
from jax.experimental import pallas as pl
from jax.experimental.pallas import tpu as pltpu


def _bilinear_matrix(in_size: int, out_size: int) -> jnp.ndarray:
    """Interpolation matrix M (out_size, in_size): out = M @ in.

    Matches torch.nn.functional.interpolate(mode='bilinear',
    align_corners=False, antialias=False) along one axis.
    """
    scale = in_size / out_size
    dst = jnp.arange(out_size, dtype=jnp.float32)
    src = scale * (dst + 0.5) - 0.5
    src = jnp.maximum(src, 0.0)                       # PyTorch clamps negative coords to 0
    i0 = jnp.clip(jnp.floor(src).astype(jnp.int32), 0, in_size - 1)
    i1 = jnp.minimum(i0 + 1, in_size - 1)
    w1 = src - i0.astype(jnp.float32)
    w0 = 1.0 - w1
    rows = jnp.arange(out_size)
    m = jnp.zeros((out_size, in_size), dtype=jnp.float32)
    m = m.at[rows, i0].add(w0)
    m = m.at[rows, i1].add(w1)
    return m


def _make_resize_kernel(P: int, H: int, W: int, Ho: int, Wo: int, fuse_stage1: bool):
    def kernel(x_ref, wy_ref, wxt_ref, o_ref):
        # x_ref:   (P, H, W)    chunk of P planes, native dtype
        # wy_ref:  (Ho, H)      row-interp matrix (f32)
        # wxt_ref: (W, Wo)      column-interp matrix, transposed (f32)
        # o_ref:   (P, Ho, Wo)  output chunk, native dtype
        wy = wy_ref[...]
        wxt = wxt_ref[...]
        if fuse_stage1:
            # Stage 1 fused across planes: one big MXU matmul (P*H, W) @ (W, Wo).
            x2 = x_ref[...].reshape(P * H, W).astype(jnp.float32)
            tmp = jnp.dot(x2, wxt, preferred_element_type=jnp.float32)   # (P*H, Wo)
            tmp = tmp.reshape(P, H, Wo)
            # Stage 2: per-plane row interpolation on VMEM-resident data.
            for p in range(P):
                o_ref[p] = jnp.dot(
                    wy, tmp[p], preferred_element_type=jnp.float32
                ).astype(o_ref.dtype)
        else:
            # Fallback (H not sublane-aligned): per-plane, still batched per grid step.
            for p in range(P):
                xp = x_ref[p].astype(jnp.float32)
                t = jnp.dot(xp, wxt, preferred_element_type=jnp.float32)      # (H, Wo)
                o_ref[p] = jnp.dot(
                    wy, t, preferred_element_type=jnp.float32
                ).astype(o_ref.dtype)

    return kernel


def resize_to_square(x: jnp.ndarray, target_size: int) -> jnp.ndarray:
    """x: (B, C, H, W) float tensor -> (B, C, target_size, target_size).

    Matches F.interpolate(x, (target_size, target_size), mode='bilinear',
    align_corners=False).  Assumes a floating-point input (as PyTorch's
    bilinear path does); integer inputs would truncate on the final cast.
    """
    B, C, H, W = x.shape
    Ho = Wo = target_size
    BC = B * C

    wy = _bilinear_matrix(H, Ho)                 # (Ho, H)  f32
    wxt = _bilinear_matrix(W, Wo).T              # (W, Wo)  f32

    planes = x.reshape(BC, H, W)                 # free reshape, native dtype

    # Choose P (planes per grid step): fill a conservative VMEM budget that is
    # safe with double buffering on all generations (v7x has only 64 MiB VMEM,
    # default scoped limit 32 MiB), and cap the unrolled stage-2 loop length.
    itemsize = planes.dtype.itemsize
    per_plane_bytes = (H * W + Ho * Wo) * itemsize
    budget_bytes = 4 * 1024 * 1024
    P = int(max(1, min(BC, budget_bytes // max(1, per_plane_bytes), 32)))
    grid = (pl.cdiv(BC, P),)

    fuse_stage1 = (H % 8 == 0)  # sublane-aligned merge of (P, H) -> P*H is layout-free

    flops = 2 * BC * (H * W * Wo + Ho * H * Wo)
    bytes_accessed = (BC * H * W + BC * Ho * Wo) * itemsize + (wy.size + wxt.size) * 4

    out = pl.pallas_call(
        _make_resize_kernel(P, H, W, Ho, Wo, fuse_stage1),
        out_shape=jax.ShapeDtypeStruct((BC, Ho, Wo), x.dtype),
        grid_spec=pltpu.PrefetchScalarGridSpec(
            num_scalar_prefetch=0,
            grid=grid,
            in_specs=[
                pl.BlockSpec((P, H, W), lambda g: (g, 0, 0)),
                pl.BlockSpec((Ho, H), lambda g: (0, 0)),
                pl.BlockSpec((W, Wo), lambda g: (0, 0)),
            ],
            out_specs=pl.BlockSpec((P, Ho, Wo), lambda g: (g, 0, 0)),
        ),
        compiler_params=pltpu.CompilerParams(
            dimension_semantics=("parallel",),
        ),
        cost_estimate=pl.CostEstimate(
            flops=flops, transcendentals=0, bytes_accessed=bytes_accessed
        ),
    )(planes, wy, wxt)

    return out.reshape(B, C, Ho, Wo)


if __name__ == "__main__":
    key = jax.random.PRNGKey(0)
    B, C, H, W = 2, 4, 16, 16
    target_size = 8

    x = jax.random.normal(key, (B, C, H, W), dtype=jnp.float32)

    y = resize_to_square(x, target_size)
    y = jax.block_until_ready(y)

    # Pure-JAX reference using the same separable formulation (f32).
    wy = _bilinear_matrix(H, target_size)
    wx = _bilinear_matrix(W, target_size)
    ref = jnp.einsum("oh,bchw,pw->bcop", wy, x, wx)

    assert y.shape == (B, C, target_size, target_size)
    assert y.dtype == x.dtype
    assert jnp.allclose(y, ref, atol=1e-5, rtol=1e-5)

    print("KERNEL_OK")
</pallas_src>

<mosaic_0001>
module attributes {stable_mosaic.version = 11 : i64} {
  func.func @kernel(%arg0: i32, %arg1: memref<8x16x16xf32, #tpu.memory_space<vmem>>, %arg2: memref<8x16xf32, #tpu.memory_space<vmem>>, %arg3: memref<16x8xf32, #tpu.memory_space<vmem>>, %arg4: memref<8x8x8xf32, #tpu.memory_space<vmem>>) attributes {dimension_semantics = [#tpu.dimension_semantics<parallel>], iteration_bounds = array<i64: 1>, scalar_prefetch = 0 : i64, scratch_operands = 0 : i64, tpu.core_type = #tpu.core_type<tc>, window_params = [{transform_indices = @transform_0, window_bounds = array<i64: 8, 16, 16>}, {pipeline_mode = #tpu.pipeline_mode<synchronous>, transform_indices = @transform_1, window_bounds = array<i64: 8, 16>}, {pipeline_mode = #tpu.pipeline_mode<synchronous>, transform_indices = @transform_2, window_bounds = array<i64: 16, 8>}, {transform_indices = @transform_3, window_bounds = array<i64: 8, 8, 8>}]} {
    %c0 = arith.constant 0 : index
    %c0_0 = arith.constant 0 : index
    %0 = vector.load %arg2[%c0, %c0_0] : memref<8x16xf32, #tpu.memory_space<vmem>>, vector<8x16xf32>
    %c0_1 = arith.constant 0 : index
    %c0_2 = arith.constant 0 : index
    %1 = vector.load %arg3[%c0_1, %c0_2] : memref<16x8xf32, #tpu.memory_space<vmem>>, vector<16x8xf32>
    %c0_3 = arith.constant 0 : index
    %c0_4 = arith.constant 0 : index
    %c0_5 = arith.constant 0 : index
    %2 = vector.load %arg1[%c0_3, %c0_4, %c0_5] : memref<8x16x16xf32, #tpu.memory_space<vmem>>, vector<8x16x16xf32>
    %3 = vector.shape_cast %2 : vector<8x16x16xf32> to vector<128x16xf32>
    %cst = arith.constant dense<0.000000e+00> : vector<128x8xf32>
    %4 = tpu.matmul %3, %1, %cst {dimension_numbers = #tpu.dot_dimension_numbers<[1], [0], [0], [1], [0, 0, 1, 1], [], []>} : vector<128x16xf32>, vector<16x8xf32>, vector<128x8xf32> -> vector<128x8xf32>
    %5 = vector.shape_cast %4 : vector<128x8xf32> to vector<8x16x8xf32>
    %6 = vector.extract_strided_slice %5 {offsets = [0, 0, 0], sizes = [1, 16, 8], strides = [1, 1, 1]} : vector<8x16x8xf32> to vector<1x16x8xf32>
    %7 = vector.shape_cast %6 : vector<1x16x8xf32> to vector<16x8xf32>
    %cst_6 = arith.constant dense<0.000000e+00> : vector<8x8xf32>
    %8 = tpu.matmul %0, %7, %cst_6 {dimension_numbers = #tpu.dot_dimension_numbers<[1], [0], [0], [1], [0, 0, 1, 1], [], []>} : vector<8x16xf32>, vector<16x8xf32>, vector<8x8xf32> -> vector<8x8xf32>
    %c0_7 = arith.constant 0 : index
    %c0_8 = arith.constant 0 : index
    %c0_9 = arith.constant 0 : index
    %9 = vector.load %arg4[%c0_7, %c0_8, %c0_9] : memref<8x8x8xf32, #tpu.memory_space<vmem>>, vector<1x8x8xf32>
    %10 = vector.shape_cast %9 : vector<1x8x8xf32> to vector<8x8xf32>
    %11 = vector.shape_cast %8 : vector<8x8xf32> to vector<1x8x8xf32>
    tpu.vector_store %arg4[%c0_7, %c0_8, %c0_9], %11 {strides = array<i32>} : memref<8x8x8xf32, #tpu.memory_space<vmem>>, vector<1x8x8xf32>,
    %12 = vector.extract_strided_slice %5 {offsets = [1, 0, 0], sizes = [1, 16, 8], strides = [1, 1, 1]} : vector<8x16x8xf32> to vector<1x16x8xf32>
    %13 = vector.shape_cast %12 : vector<1x16x8xf32> to vector<16x8xf32>
    %cst_10 = arith.constant dense<0.000000e+00> : vector<8x8xf32>
    %14 = tpu.matmul %0, %13, %cst_10 {dimension_numbers = #tpu.dot_dimension_numbers<[1], [0], [0], [1], [0, 0, 1, 1], [], []>} : vector<8x16xf32>, vector<16x8xf32>, vector<8x8xf32> -> vector<8x8xf32>
    %c1 = arith.constant 1 : index
    %c0_11 = arith.constant 0 : index
    %c0_12 = arith.constant 0 : index
    %15 = vector.load %arg4[%c1, %c0_11, %c0_12] : memref<8x8x8xf32, #tpu.memory_space<vmem>>, vector<1x8x8xf32>
    %16 = vector.shape_cast %15 : vector<1x8x8xf32> to vector<8x8xf32>
    %17 = vector.shape_cast %14 : vector<8x8xf32> to vector<1x8x8xf32>
    tpu.vector_store %arg4[%c1, %c0_11, %c0_12], %17 {strides = array<i32>} : memref<8x8x8xf32, #tpu.memory_space<vmem>>, vector<1x8x8xf32>,
    %18 = vector.extract_strided_slice %5 {offsets = [2, 0, 0], sizes = [1, 16, 8], strides = [1, 1, 1]} : vector<8x16x8xf32> to vector<1x16x8xf32>
    %19 = vector.shape_cast %18 : vector<1x16x8xf32> to vector<16x8xf32>
    %cst_13 = arith.constant dense<0.000000e+00> : vector<8x8xf32>
    %20 = tpu.matmul %0, %19, %cst_13 {dimension_numbers = #tpu.dot_dimension_numbers<[1], [0], [0], [1], [0, 0, 1, 1], [], []>} : vector<8x16xf32>, vector<16x8xf32>, vector<8x8xf32> -> vector<8x8xf32>
    %c2 = arith.constant 2 : index
    %c0_14 = arith.constant 0 : index
    %c0_15 = arith.constant 0 : index
    %21 = vector.load %arg4[%c2, %c0_14, %c0_15] : memref<8x8x8xf32, #tpu.memory_space<vmem>>, vector<1x8x8xf32>
    %22 = vector.shape_cast %21 : vector<1x8x8xf32> to vector<8x8xf32>
    %23 = vector.shape_cast %20 : vector<8x8xf32> to vector<1x8x8xf32>
    tpu.vector_store %arg4[%c2, %c0_14, %c0_15], %23 {strides = array<i32>} : memref<8x8x8xf32, #tpu.memory_space<vmem>>, vector<1x8x8xf32>,
    %24 = vector.extract_strided_slice %5 {offsets = [3, 0, 0], sizes = [1, 16, 8], strides = [1, 1, 1]} : vector<8x16x8xf32> to vector<1x16x8xf32>
    %25 = vector.shape_cast %24 : vector<1x16x8xf32> to vector<16x8xf32>
    %cst_16 = arith.constant dense<0.000000e+00> : vector<8x8xf32>
    %26 = tpu.matmul %0, %25, %cst_16 {dimension_numbers = #tpu.dot_dimension_numbers<[1], [0], [0], [1], [0, 0, 1, 1], [], []>} : vector<8x16xf32>, vector<16x8xf32>, vector<8x8xf32> -> vector<8x8xf32>
    %c3 = arith.constant 3 : index
    %c0_17 = arith.constant 0 : index
    %c0_18 = arith.constant 0 : index
    %27 = vector.load %arg4[%c3, %c0_17, %c0_18] : memref<8x8x8xf32, #tpu.memory_space<vmem>>, vector<1x8x8xf32>
    %28 = vector.shape_cast %27 : vector<1x8x8xf32> to vector<8x8xf32>
    %29 = vector.shape_cast %26 : vector<8x8xf32> to vector<1x8x8xf32>
    tpu.vector_store %arg4[%c3, %c0_17, %c0_18], %29 {strides = array<i32>} : memref<8x8x8xf32, #tpu.memory_space<vmem>>, vector<1x8x8xf32>,
    %30 = vector.extract_strided_slice %5 {offsets = [4, 0, 0], sizes = [1, 16, 8], strides = [1, 1, 1]} : vector<8x16x8xf32> to vector<1x16x8xf32>
    %31 = vector.shape_cast %30 : vector<1x16x8xf32> to vector<16x8xf32>
    %cst_19 = arith.constant dense<0.000000e+00> : vector<8x8xf32>
    %32 = tpu.matmul %0, %31, %cst_19 {dimension_numbers = #tpu.dot_dimension_numbers<[1], [0], [0], [1], [0, 0, 1, 1], [], []>} : vector<8x16xf32>, vector<16x8xf32>, vector<8x8xf32> -> vector<8x8xf32>
    %c4 = arith.constant 4 : index
    %c0_20 = arith.constant 0 : index
    %c0_21 = arith.constant 0 : index
    %33 = vector.load %arg4[%c4, %c0_20, %c0_21] : memref<8x8x8xf32, #tpu.memory_space<vmem>>, vector<1x8x8xf32>
    %34 = vector.shape_cast %33 : vector<1x8x8xf32> to vector<8x8xf32>
    %35 = vector.shape_cast %32 : vector<8x8xf32> to vector<1x8x8xf32>
    tpu.vector_store %arg4[%c4, %c0_20, %c0_21], %35 {strides = array<i32>} : memref<8x8x8xf32, #tpu.memory_space<vmem>>, vector<1x8x8xf32>,
    %36 = vector.extract_strided_slice %5 {offsets = [5, 0, 0], sizes = [1, 16, 8], strides = [1, 1, 1]} : vector<8x16x8xf32> to vector<1x16x8xf32>
    %37 = vector.shape_cast %36 : vector<1x16x8xf32> to vector<16x8xf32>
    %cst_22 = arith.constant dense<0.000000e+00> : vector<8x8xf32>
    %38 = tpu.matmul %0, %37, %cst_22 {dimension_numbers = #tpu.dot_dimension_numbers<[1], [0], [0], [1], [0, 0, 1, 1], [], []>} : vector<8x16xf32>, vector<16x8xf32>, vector<8x8xf32> -> vector<8x8xf32>
    %c5 = arith.constant 5 : index
    %c0_23 = arith.constant 0 : index
    %c0_24 = arith.constant 0 : index
    %39 = vector.load %arg4[%c5, %c0_23, %c0_24] : memref<8x8x8xf32, #tpu.memory_space<vmem>>, vector<1x8x8xf32>
    %40 = vector.shape_cast %39 : vector<1x8x8xf32> to vector<8x8xf32>
    %41 = vector.shape_cast %38 : vector<8x8xf32> to vector<1x8x8xf32>
    tpu.vector_store %arg4[%c5, %c0_23, %c0_24], %41 {strides = array<i32>} : memref<8x8x8xf32, #tpu.memory_space<vmem>>, vector<1x8x8xf32>,
    %42 = vector.extract_strided_slice %5 {offsets = [6, 0, 0], sizes = [1, 16, 8], strides = [1, 1, 1]} : vector<8x16x8xf32> to vector<1x16x8xf32>
    %43 = vector.shape_cast %42 : vector<1x16x8xf32> to vector<16x8xf32>
    %cst_25 = arith.constant dense<0.000000e+00> : vector<8x8xf32>
    %44 = tpu.matmul %0, %43, %cst_25 {dimension_numbers = #tpu.dot_dimension_numbers<[1], [0], [0], [1], [0, 0, 1, 1], [], []>} : vector<8x16xf32>, vector<16x8xf32>, vector<8x8xf32> -> vector<8x8xf32>
    %c6 = arith.constant 6 : index
    %c0_26 = arith.constant 0 : index
    %c0_27 = arith.constant 0 : index
    %45 = vector.load %arg4[%c6, %c0_26, %c0_27] : memref<8x8x8xf32, #tpu.memory_space<vmem>>, vector<1x8x8xf32>
    %46 = vector.shape_cast %45 : vector<1x8x8xf32> to vector<8x8xf32>
    %47 = vector.shape_cast %44 : vector<8x8xf32> to vector<1x8x8xf32>
    tpu.vector_store %arg4[%c6, %c0_26, %c0_27], %47 {strides = array<i32>} : memref<8x8x8xf32, #tpu.memory_space<vmem>>, vector<1x8x8xf32>,
    %48 = vector.extract_strided_slice %5 {offsets = [7, 0, 0], sizes = [1, 16, 8], strides = [1, 1, 1]} : vector<8x16x8xf32> to vector<1x16x8xf32>
    %49 = vector.shape_cast %48 : vector<1x16x8xf32> to vector<16x8xf32>
    %cst_28 = arith.constant dense<0.000000e+00> : vector<8x8xf32>
    %50 = tpu.matmul %0, %49, %cst_28 {dimension_numbers = #tpu.dot_dimension_numbers<[1], [0], [0], [1], [0, 0, 1, 1], [], []>} : vector<8x16xf32>, vector<16x8xf32>, vector<8x8xf32> -> vector<8x8xf32>
    %c7 = arith.constant 7 : index
    %c0_29 = arith.constant 0 : index
    %c0_30 = arith.constant 0 : index
    %51 = vector.load %arg4[%c7, %c0_29, %c0_30] : memref<8x8x8xf32, #tpu.memory_space<vmem>>, vector<1x8x8xf32>
    %52 = vector.shape_cast %51 : vector<1x8x8xf32> to vector<8x8xf32>
    %53 = vector.shape_cast %50 : vector<8x8xf32> to vector<1x8x8xf32>
    tpu.vector_store %arg4[%c7, %c0_29, %c0_30], %53 {strides = array<i32>} : memref<8x8x8xf32, #tpu.memory_space<vmem>>, vector<1x8x8xf32>,
    return
  }
  func.func @transform_0(%arg0: i32) -> (i32, i32, i32) {
    %c0_i32 = arith.constant 0 : i32
    %c0_i32_0 = arith.constant 0 : i32
    %c0_i32_1 = arith.constant 0 : i32
    return %arg0, %c0_i32, %c0_i32_0 : i32, i32, i32
  }
  func.func @transform_1(%arg0: i32) -> (i32, i32) {
    %c0_i32 = arith.constant 0 : i32
    %c0_i32_0 = arith.constant 0 : i32
    %c0_i32_1 = arith.constant 0 : i32
    return %c0_i32, %c0_i32_0 : i32, i32
  }
  func.func @transform_2(%arg0: i32) -> (i32, i32) {
    %c0_i32 = arith.constant 0 : i32
    %c0_i32_0 = arith.constant 0 : i32
    %c0_i32_1 = arith.constant 0 : i32
    return %c0_i32, %c0_i32_0 : i32, i32
  }
  func.func @transform_3(%arg0: i32) -> (i32, i32, i32) {
    %c0_i32 = arith.constant 0 : i32
    %c0_i32_0 = arith.constant 0 : i32
    %c0_i32_1 = arith.constant 0 : i32
    return %arg0, %c0_i32, %c0_i32_0 : i32, i32, i32
  }
}

</mosaic_0001>

<llo_original>
// kernel: tpu_custom_call.1
$region0: #{tpu_custom_call.1}
  #allocation0 [shape = 'u32[]', space=smem, size = 0x4, offset = 0x4, fixed_abs, tag = 'smem constant byte address 0x4 - core index']
  #allocation1 [shape = 'u32[144,128]{1,0:T(1,128)}', space=vmem, size = 0x12000, scoped, tag = 'internal scratch']
  %s0 = inlined_call_operand.hbm [shape: f32[8,16,16], index: 0, kind: input, shape index: {}]
  %s1 = inlined_call_operand.vmem [shape: f32[8,16], index: 1, kind: input, shape index: {}]
  %s2 = inlined_call_operand.vmem [shape: f32[16,8], index: 2, kind: input, shape index: {}]
  %s3 = inlined_call_operand.hbm [shape: f32[8,8,8], index: 3, kind: output, shape index: {}]
  %s4 = sld [smem:[#allocation0]]
  $region26: #{tpu_custom_call.1} parent=0
    _
  %s6 = ssub.s32 1, %s4
  %s7 = scalar_select 0, %s6, %s4
  $region1: #{tpu_custom_call.1} parent=0
    #allocation2 [shape = 'u8[65536]{0}', space=vmem, size = 0x10000, scoped, tag = 'input window, operand 0, single buffered']
    #allocation3 [shape = 's32[1]{0}', space=sflag, size = 0x4, scoped, tag = 'scoped memory for tpu_custom_call.1']
    #allocation4 [shape = 's32[1]{0}', space=sflag, size = 0x4, scoped, tag = 'scoped memory for tpu_custom_call.1']
    #allocation5 [shape = 'u8[32768]{0}', space=vmem, size = 0x8000, scoped, tag = 'output window, operand 0, single buffered']
    %8 = vsyncpa [#allocation3], 0
    %9 = vsyncpa [#allocation4], 0
    // Predicated region
    $region2: #{tpu_custom_call.1} parent=1 // pred_check
      _
    $region3: #{tpu_custom_call.1} parent=1 // pred_check_branch
      %11 = sbr.rel (0) target = $region5
    $region4: #{tpu_custom_call.1} parent=1 // pred_region
      %s13 = ssub.s32 2048, 2048
      %14 = vsyncadd [#allocation3], %s13
      %s15 = sshll.u32 [#allocation2], 4
      %s16 = int_to_ptr.vmem [resolvable:$true] %s15
      %21 = dma.hbm_to_vmem [thread:$0]  %s0, 2048, %s16, [#allocation3], 128, 128, 8
    $region5: #{tpu_custom_call.1} parent=1 // pred_fallthru
      _
    // Predicated region
    $region6: #{tpu_custom_call.1} parent=1 // pred_check
      _
    $region7: #{tpu_custom_call.1} parent=1 // pred_check_branch
      %23 = sbr.rel (0) target = $region9
    $region8: #{tpu_custom_call.1} parent=1 // pred_region
      _
    $region9: #{tpu_custom_call.1} parent=1 // pred_fallthru
      _
    // Predicated region
    $region10: #{tpu_custom_call.1} parent=1 // pred_check
      _
    $region11: #{tpu_custom_call.1} parent=1 // pred_check_branch
      %25 = sbr.rel (0) target = $region13
    $region12: #{tpu_custom_call.1} parent=1 // pred_region
      _
    $region13: #{tpu_custom_call.1} parent=1 // pred_fallthru
      _
    // Predicated region
    $region14: #{tpu_custom_call.1} parent=1 // pred_check
      _
    $region15: #{tpu_custom_call.1} parent=1 // pred_check_branch
      %27 = sbr.rel (0) target = $region17
    $region16: #{tpu_custom_call.1} parent=1 // pred_region
      %28 = dma.done [#allocation3], 2048
    $region17: #{tpu_custom_call.1} parent=1 // pred_fallthru
      _
    %v29 = vld [vmem:[%s1] sm:$0xff]
    %v30 = vld [vmem:[%s2] sm:$0xff]
    %v31 = vld [vmem:[%s2 + $0x8] sm:$0xff]
    %v32 = vld [vmem:[#allocation2] sm:$0xff]
    %v33 = vld [vmem:[#allocation2 + $0x8] sm:$0xff]
    %v34 = vld [vmem:[#allocation2 + $0x10] sm:$0xff]
    %v35 = vld [vmem:[#allocation2 + $0x18] sm:$0xff]
    %v36 = vld [vmem:[#allocation2 + $0x20] sm:$0xff]
    %v37 = vld [vmem:[#allocation2 + $0x28] sm:$0xff]
    %v38 = vld [vmem:[#allocation2 + $0x30] sm:$0xff]
    %v39 = vld [vmem:[#allocation2 + $0x38] sm:$0xff]
    %v40 = vld [vmem:[#allocation2 + $0x40] sm:$0xff]
    %v41 = vld [vmem:[#allocation2 + $0x48] sm:$0xff]
    %v42 = vld [vmem:[#allocation2 + $0x50] sm:$0xff]
    %v43 = vld [vmem:[#allocation2 + $0x58] sm:$0xff]
    %v44 = vld [vmem:[#allocation2 + $0x60] sm:$0xff]
    %v45 = vld [vmem:[#allocation2 + $0x68] sm:$0xff]
    %v46 = vld [vmem:[#allocation2 + $0x70] sm:$0xff]
    %v47 = vld [vmem:[#allocation2 + $0x78] sm:$0xff]
    %vm48 = vcmask 130048
    %v50 = vsel %vm48, %v32, 0
    %v53 = vsel %vm48, %v33, 0
    %v56 = vsel %vm48, %v34, 0
    %v59 = vsel %vm48, %v35, 0
    %v62 = vsel %vm48, %v36, 0
    %v65 = vsel %vm48, %v37, 0
    %v68 = vsel %vm48, %v38, 0
    %v71 = vsel %vm48, %v39, 0
    %v74 = vsel %vm48, %v40, 0
    %v77 = vsel %vm48, %v41, 0
    %v80 = vsel %vm48, %v42, 0
    %v83 = vsel %vm48, %v43, 0
    %v86 = vsel %vm48, %v44, 0
    %v89 = vsel %vm48, %v45, 0
    %v92 = vsel %vm48, %v46, 0
    %v95 = vsel %vm48, %v47, 0
    %97 = vmatprep.subr.mxu0 0.0
    %98 = vmatpush1.msra.mxu0 %v30
    %99 = vmatprep.subr.mxu0 0.0
    %100 = vmatpush1.msra.mxu0 %v31
    %101 = vmatprep.subr.mxu0 0.0
    %102 = vmatpush1.msra.mxu0 0.0
    %103 = vmatprep.subr.mxu0 0.0
    %104 = vmatpush1.msra.mxu0 0.0
    %105 = vmatprep.subr.mxu0 0.0
    %106 = vmatpush1.msra.mxu0 0.0
    %107 = vmatprep.subr.mxu0 0.0
    %108 = vmatpush1.msra.mxu0 0.0
    %109 = vmatprep.subr.mxu0 0.0
    %110 = vmatpush1.msra.mxu0 0.0
    %111 = vmatprep.subr.mxu0 0.0
    %112 = vmatpush1.msra.mxu0 0.0
    %113 = vmatprep.subr.mxu0 0.0
    %114 = vmatpush1.msra.mxu0 0.0
    %115 = vmatprep.subr.mxu0 0.0
    %116 = vmatpush1.msra.mxu0 0.0
    %117 = vmatprep.subr.mxu0 0.0
    %118 = vmatpush1.msra.mxu0 0.0
    %119 = vmatprep.subr.mxu0 0.0
    %120 = vmatpush1.msra.mxu0 0.0
    %121 = vmatprep.subr.mxu0 0.0
    %122 = vmatpush1.msra.mxu0 0.0
    %123 = vmatprep.subr.mxu0 0.0
    %124 = vmatpush1.msra.mxu0 0.0
    %125 = vmatprep.subr.mxu0 0.0
    %126 = vmatpush1.msra.mxu0 0.0
    %127 = vmatprep.subr.mxu0 0.0
    %128 = vmatpush1.msra.mxu0 0.0
    %129 = vmatprep.subr.mxu0 0.0
    %130 = vmatpush1.msra.mxu0 0.0
    %131 = vmatprep.subr.mxu0 0.0
    %132 = vmatpush1.msra.mxu0 0.0
    %133 = vmatprep.subr.mxu0 0.0
    %134 = vmatpush1.msra.mxu0 0.0
    %135 = vmatprep.subr.mxu0 0.0
    %136 = vmatpush1.msra.mxu0 0.0
    %137 = vmatprep.subr.mxu0 0.0
    %138 = vmatpush1.msra.mxu0 0.0
    %139 = vmatprep.subr.mxu0 0.0
    %140 = vmatpush1.msra.mxu0 0.0
    %141 = vmatprep.subr.mxu0 0.0
    %142 = vmatpush1.msra.mxu0 0.0
    %143 = vmatprep.subr.mxu0 0.0
    %144 = vmatpush1.msra.mxu0 0.0
    %145 = vmatprep.subr.mxu0 0.0
    %146 = vmatpush1.msra.mxu0 0.0
    %147 = vmatprep.subr.mxu0 0.0
    %148 = vmatpush1.msra.mxu0 0.0
    %149 = vmatprep.subr.mxu0 0.0
    %150 = vmatpush1.msra.mxu0 0.0
    %151 = vmatprep.subr.mxu0 0.0
    %152 = vmatpush1.msra.mxu0 0.0
    %153 = vmatprep.subr.mxu0 0.0
    %154 = vmatpush1.msra.mxu0 0.0
    %155 = vmatprep.subr.mxu0 0.0
    %156 = vmatpush1.msra.mxu0 0.0
    %157 = vmatprep.subr.mxu0 0.0
    %158 = vmatpush1.msra.mxu0 0.0
    %159 = vmatprep.subr.mxu0 0.0
    %160 = vmatpush1.msra.mxu0 0.0
    %161 = vmatprep.mubr.f32.mxu0 0.0
    %162 = vmatmul.mubr.f32.gmra.mrb[0].mxu0 %v50
    %v163 = vpop.f32.mrb[0].mxu0
    %v164 = vadd.f32 0.0, %v163
    %v165 = vpop.f32.mrb[0].mxu0
    %166 = vmatprep.mubr.f32.mxu0 0.0
    %167 = vmatmul.mubr.f32.gmra.mrb[0].mxu0 %v53
    %v168 = vpop.f32.mrb[0].mxu0
    %v169 = vadd.f32 0.0, %v168
    %v170 = vpop.f32.mrb[0].mxu0
    %171 = vmatprep.mubr.f32.mxu0 0.0
    %172 = vmatmul.mubr.f32.gmra.mrb[0].mxu0 %v56
    %v173 = vpop.f32.mrb[0].mxu0
    %v174 = vadd.f32 0.0, %v173
    %v175 = vpop.f32.mrb[0].mxu0
    %176 = vmatprep.mubr.f32.mxu0 0.0
    %177 = vmatmul.mubr.f32.gmra.mrb[0].mxu0 %v59
    %v178 = vpop.f32.mrb[0].mxu0
    %v179 = vadd.f32 0.0, %v178
    %v180 = vpop.f32.mrb[0].mxu0
    %181 = vmatprep.mubr.f32.mxu0 0.0
    %182 = vmatmul.mubr.f32.gmra.mrb[0].mxu0 %v62
    %v183 = vpop.f32.mrb[0].mxu0
    %v184 = vadd.f32 0.0, %v183
    %v185 = vpop.f32.mrb[0].mxu0
    %186 = vmatprep.mubr.f32.mxu0 0.0
    %187 = vmatmul.mubr.f32.gmra.mrb[0].mxu0 %v65
    %v188 = vpop.f32.mrb[0].mxu0
    %v189 = vadd.f32 0.0, %v188
    %v190 = vpop.f32.mrb[0].mxu0
    %191 = vmatprep.mubr.f32.mxu0 0.0
    %192 = vmatmul.mubr.f32.gmra.mrb[0].mxu0 %v68
    %v193 = vpop.f32.mrb[0].mxu0
    %v194 = vadd.f32 0.0, %v193
    %v195 = vpop.f32.mrb[0].mxu0
    %196 = vmatprep.mubr.f32.mxu0 0.0
    %197 = vmatmul.mubr.f32.gmra.mrb[0].mxu0 %v71
    %v198 = vpop.f32.mrb[0].mxu0
    %v199 = vadd.f32 0.0, %v198
    %v200 = vpop.f32.mrb[0].mxu0
    %201 = vmatprep.mubr.f32.mxu0 0.0
    %202 = vmatmul.mubr.f32.gmra.mrb[0].mxu0 %v74
    %v203 = vpop.f32.mrb[0].mxu0
    %v204 = vadd.f32 0.0, %v203
    %v205 = vpop.f32.mrb[0].mxu0
    %206 = vmatprep.mubr.f32.mxu0 0.0
    %207 = vmatmul.mubr.f32.gmra.mrb[0].mxu0 %v77
    %v208 = vpop.f32.mrb[0].mxu0
    %v209 = vadd.f32 0.0, %v208
    %v210 = vpop.f32.mrb[0].mxu0
    %211 = vmatprep.mubr.f32.mxu0 0.0
    %212 = vmatmul.mubr.f32.gmra.mrb[0].mxu0 %v80
    %v213 = vpop.f32.mrb[0].mxu0
    %v214 = vadd.f32 0.0, %v213
    %v215 = vpop.f32.mrb[0].mxu0
    %216 = vmatprep.mubr.f32.mxu0 0.0
    %217 = vmatmul.mubr.f32.gmra.mrb[0].mxu0 %v83
    %v218 = vpop.f32.mrb[0].mxu0
    %v219 = vadd.f32 0.0, %v218
    %v220 = vpop.f32.mrb[0].mxu0
    %221 = vmatprep.mubr.f32.mxu0 0.0
    %222 = vmatmul.mubr.f32.gmra.mrb[0].mxu0 %v86
    %v223 = vpop.f32.mrb[0].mxu0
    %v224 = vadd.f32 0.0, %v223
    %v225 = vpop.f32.mrb[0].mxu0
    %226 = vmatprep.mubr.f32.mxu0 0.0
    %227 = vmatmul.mubr.f32.gmra.mrb[0].mxu0 %v89
    %v228 = vpop.f32.mrb[0].mxu0
    %v229 = vadd.f32 0.0, %v228
    %v230 = vpop.f32.mrb[0].mxu0
    %231 = vmatprep.mubr.f32.mxu0 0.0
    %232 = vmatmul.mubr.f32.gmra.mrb[0].mxu0 %v92
    %v233 = vpop.f32.mrb[0].mxu0
    %v234 = vadd.f32 0.0, %v233
    %v235 = vpop.f32.mrb[0].mxu0
    %236 = vmatprep.mubr.f32.mxu0 0.0
    %237 = vmatmul.mubr.f32.gmra.mrb[0].mxu0 %v95
    %v238 = vpop.f32.mrb[0].mxu0
    %v239 = vadd.f32 0.0, %v238
    %v240 = vpop.f32.mrb[0].mxu0
    %241 = vdwg.mxu0
    %v243 = vsel %vm48, %v29, 0
    %245 = vmatprep.subr.mxu0 0.0
    %246 = vmatpush1.msra.mxu0 %v164
    %247 = vmatprep.subr.mxu0 0.0
    %248 = vmatpush1.msra.mxu0 %v169
    %249 = vmatprep.subr.mxu0 0.0
    %250 = vmatpush1.msra.mxu0 0.0
    %251 = vmatprep.subr.mxu0 0.0
    %252 = vmatpush1.msra.mxu0 0.0
    %253 = vmatprep.subr.mxu0 0.0
    %254 = vmatpush1.msra.mxu0 0.0
    %255 = vmatprep.subr.mxu0 0.0
    %256 = vmatpush1.msra.mxu0 0.0
    %257 = vmatprep.subr.mxu0 0.0
    %258 = vmatpush1.msra.mxu0 0.0
    %259 = vmatprep.subr.mxu0 0.0
    %260 = vmatpush1.msra.mxu0 0.0
    %261 = vmatprep.subr.mxu0 0.0
    %262 = vmatpush1.msra.mxu0 0.0
    %263 = vmatprep.subr.mxu0 0.0
    %264 = vmatpush1.msra.mxu0 0.0
    %265 = vmatprep.subr.mxu0 0.0
    %266 = vmatpush1.msra.mxu0 0.0
    %267 = vmatprep.subr.mxu0 0.0
    %268 = vmatpush1.msra.mxu0 0.0
    %269 = vmatprep.subr.mxu0 0.0
    %270 = vmatpush1.msra.mxu0 0.0
    %271 = vmatprep.subr.mxu0 0.0
    %272 = vmatpush1.msra.mxu0 0.0
    %273 = vmatprep.subr.mxu0 0.0
    %274 = vmatpush1.msra.mxu0 0.0
    %275 = vmatprep.subr.mxu0 0.0
    %276 = vmatpush1.msra.mxu0 0.0
    %277 = vmatprep.subr.mxu0 0.0
    %278 = vmatpush1.msra.mxu0 0.0
    %279 = vmatprep.subr.mxu0 0.0
    %280 = vmatpush1.msra.mxu0 0.0
    %281 = vmatprep.subr.mxu0 0.0
    %282 = vmatpush1.msra.mxu0 0.0
    %283 = vmatprep.subr.mxu0 0.0
    %284 = vmatpush1.msra.mxu0 0.0
    %285 = vmatprep.subr.mxu0 0.0
    %286 = vmatpush1.msra.mxu0 0.0
    %287 = vmatprep.subr.mxu0 0.0
    %288 = vmatpush1.msra.mxu0 0.0
    %289 = vmatprep.subr.mxu0 0.0
    %290 = vmatpush1.msra.mxu0 0.0
    %291 = vmatprep.subr.mxu0 0.0
    %292 = vmatpush1.msra.mxu0 0.0
    %293 = vmatprep.subr.mxu0 0.0
    %294 = vmatpush1.msra.mxu0 0.0
    %295 = vmatprep.subr.mxu0 0.0
    %296 = vmatpush1.msra.mxu0 0.0
    %297 = vmatprep.subr.mxu0 0.0
    %298 = vmatpush1.msra.mxu0 0.0
    %299 = vmatprep.subr.mxu0 0.0
    %300 = vmatpush1.msra.mxu0 0.0
    %301 = vmatprep.subr.mxu0 0.0
    %302 = vmatpush1.msra.mxu0 0.0
    %303 = vmatprep.subr.mxu0 0.0
    %304 = vmatpush1.msra.mxu0 0.0
    %305 = vmatprep.subr.mxu0 0.0
    %306 = vmatpush1.msra.mxu0 0.0
    %307 = vmatprep.subr.mxu0 0.0
    %308 = vmatpush1.msra.mxu0 0.0
    %309 = vmatprep.mubr.f32.mxu0 0.0
    %310 = vmatmul.mubr.f32.gmra.mrb[0].mxu0 %v243
    %v311 = vpop.f32.mrb[0].mxu0
    %v312 = vadd.f32 0.0, %v311
    %v313 = vpop.f32.mrb[0].mxu0
    %314 = vdwg.mxu0
    %vm315 = vcmask 64512
    %316 = vst.msk [vmem:[#allocation5] sm:$0xff] %vm315, %v312
    %317 = vmatprep.subr.mxu0 0.0
    %318 = vmatpush1.msra.mxu0 %v174
    %319 = vmatprep.subr.mxu0 0.0
    %320 = vmatpush1.msra.mxu0 %v179
    %321 = vmatprep.subr.mxu0 0.0
    %322 = vmatpush1.msra.mxu0 0.0
    %323 = vmatprep.subr.mxu0 0.0
    %324 = vmatpush1.msra.mxu0 0.0
    %325 = vmatprep.subr.mxu0 0.0
    %326 = vmatpush1.msra.mxu0 0.0
    %327 = vmatprep.subr.mxu0 0.0
    %328 = vmatpush1.msra.mxu0 0.0
    %329 = vmatprep.subr.mxu0 0.0
    %330 = vmatpush1.msra.mxu0 0.0
    %331 = vmatprep.subr.mxu0 0.0
    %332 = vmatpush1.msra.mxu0 0.0
    %333 = vmatprep.subr.mxu0 0.0
    %334 = vmatpush1.msra.mxu0 0.0
    %335 = vmatprep.subr.mxu0 0.0
    %336 = vmatpush1.msra.mxu0 0.0
    %337 = vmatprep.subr.mxu0 0.0
    %338 = vmatpush1.msra.mxu0 0.0
    %339 = vmatprep.subr.mxu0 0.0
    %340 = vmatpush1.msra.mxu0 0.0
    %341 = vmatprep.subr.mxu0 0.0
    %342 = vmatpush1.msra.mxu0 0.0
    %343 = vmatprep.subr.mxu0 0.0
    %344 = vmatpush1.msra.mxu0 0.0
    %345 = vmatprep.subr.mxu0 0.0
    %346 = vmatpush1.msra.mxu0 0.0
    %347 = vmatprep.subr.mxu0 0.0
    %348 = vmatpush1.msra.mxu0 0.0
    %349 = vmatprep.subr.mxu0 0.0
    %350 = vmatpush1.msra.mxu0 0.0
    %351 = vmatprep.subr.mxu0 0.0
    %352 = vmatpush1.msra.mxu0 0.0
    %353 = vmatprep.subr.mxu0 0.0
    %354 = vmatpush1.msra.mxu0 0.0
    %355 = vmatprep.subr.mxu0 0.0
    %356 = vmatpush1.msra.mxu0 0.0
    %357 = vmatprep.subr.mxu0 0.0
    %358 = vmatpush1.msra.mxu0 0.0
    %359 = vmatprep.subr.mxu0 0.0
    %360 = vmatpush1.msra.mxu0 0.0
    %361 = vmatprep.subr.mxu0 0.0
    %362 = vmatpush1.msra.mxu0 0.0
    %363 = vmatprep.subr.mxu0 0.0
    %364 = vmatpush1.msra.mxu0 0.0
    %365 = vmatprep.subr.mxu0 0.0
    %366 = vmatpush1.msra.mxu0 0.0
    %367 = vmatprep.subr.mxu0 0.0
    %368 = vmatpush1.msra.mxu0 0.0
    %369 = vmatprep.subr.mxu0 0.0
    %370 = vmatpush1.msra.mxu0 0.0
    %371 = vmatprep.subr.mxu0 0.0
    %372 = vmatpush1.msra.mxu0 0.0
    %373 = vmatprep.subr.mxu0 0.0
    %374 = vmatpush1.msra.mxu0 0.0
    %375 = vmatprep.subr.mxu0 0.0
    %376 = vmatpush1.msra.mxu0 0.0
    %377 = vmatprep.subr.mxu0 0.0
    %378 = vmatpush1.msra.mxu0 0.0
    %379 = vmatprep.subr.mxu0 0.0
    %380 = vmatpush1.msra.mxu0 0.0
    %381 = vmatprep.mubr.f32.mxu0 0.0
    %382 = vmatmul.mubr.f32.gmra.mrb[0].mxu0 %v243
    %v383 = vpop.f32.mrb[0].mxu0
    %v384 = vadd.f32 0.0, %v383
    %v385 = vpop.f32.mrb[0].mxu0
    %386 = vdwg.mxu0
    %s387 = scalar_lea.vmem [#allocation5], 8
    %388 = vst.msk [vmem:[%s387] sm:$0xff] %vm315, %v384
    %389 = vmatprep.subr.mxu0 0.0
    %390 = vmatpush1.msra.mxu0 %v184
    %391 = vmatprep.subr.mxu0 0.0
    %392 = vmatpush1.msra.mxu0 %v189
    %393 = vmatprep.subr.mxu0 0.0
    %394 = vmatpush1.msra.mxu0 0.0
    %395 = vmatprep.subr.mxu0 0.0
    %396 = vmatpush1.msra.mxu0 0.0
    %397 = vmatprep.subr.mxu0 0.0
    %398 = vmatpush1.msra.mxu0 0.0
    %399 = vmatprep.subr.mxu0 0.0
    %400 = vmatpush1.msra.mxu0 0.0
    %401 = vmatprep.subr.mxu0 0.0
    %402 = vmatpush1.msra.mxu0 0.0
    %403 = vmatprep.subr.mxu0 0.0
    %404 = vmatpush1.msra.mxu0 0.0
    %405 = vmatprep.subr.mxu0 0.0
    %406 = vmatpush1.msra.mxu0 0.0
    %407 = vmatprep.subr.mxu0 0.0
    %408 = vmatpush1.msra.mxu0 0.0
    %409 = vmatprep.subr.mxu0 0.0
    %410 = vmatpush1.msra.mxu0 0.0
    %411 = vmatprep.subr.mxu0 0.0
    %412 = vmatpush1.msra.mxu0 0.0
    %413 = vmatprep.subr.mxu0 0.0
    %414 = vmatpush1.msra.mxu0 0.0
    %415 = vmatprep.subr.mxu0 0.0
    %416 = vmatpush1.msra.mxu0 0.0
    %417 = vmatprep.subr.mxu0 0.0
    %418 = vmatpush1.msra.mxu0 0.0
    %419 = vmatprep.subr.mxu0 0.0
    %420 = vmatpush1.msra.mxu0 0.0
    %421 = vmatprep.subr.mxu0 0.0
    %422 = vmatpush1.msra.mxu0 0.0
    %423 = vmatprep.subr.mxu0 0.0
    %424 = vmatpush1.msra.mxu0 0.0
    %425 = vmatprep.subr.mxu0 0.0
    %426 = vmatpush1.msra.mxu0 0.0
    %427 = vmatprep.subr.mxu0 0.0
    %428 = vmatpush1.msra.mxu0 0.0
    %429 = vmatprep.subr.mxu0 0.0
    %430 = vmatpush1.msra.mxu0 0.0
    %431 = vmatprep.subr.mxu0 0.0
    %432 = vmatpush1.msra.mxu0 0.0
    %433 = vmatprep.subr.mxu0 0.0
    %434 = vmatpush1.msra.mxu0 0.0
    %435 = vmatprep.subr.mxu0 0.0
    %436 = vmatpush1.msra.mxu0 0.0
    %437 = vmatprep.subr.mxu0 0.0
    %438 = vmatpush1.msra.mxu0 0.0
    %439 = vmatprep.subr.mxu0 0.0
    %440 = vmatpush1.msra.mxu0 0.0
    %441 = vmatprep.subr.mxu0 0.0
    %442 = vmatpush1.msra.mxu0 0.0
    %443 = vmatprep.subr.mxu0 0.0
    %444 = vmatpush1.msra.mxu0 0.0
    %445 = vmatprep.subr.mxu0 0.0
    %446 = vmatpush1.msra.mxu0 0.0
    %447 = vmatprep.subr.mxu0 0.0
    %448 = vmatpush1.msra.mxu0 0.0
    %449 = vmatprep.subr.mxu0 0.0
    %450 = vmatpush1.msra.mxu0 0.0
    %451 = vmatprep.subr.mxu0 0.0
    %452 = vmatpush1.msra.mxu0 0.0
    %453 = vmatprep.mubr.f32.mxu0 0.0
    %454 = vmatmul.mubr.f32.gmra.mrb[0].mxu0 %v243
    %v455 = vpop.f32.mrb[0].mxu0
    %v456 = vadd.f32 0.0, %v455
    %v457 = vpop.f32.mrb[0].mxu0
    %458 = vdwg.mxu0
    %s459 = scalar_lea.vmem [#allocation5], 16
    %460 = vst.msk [vmem:[%s459] sm:$0xff] %vm315, %v456
    %461 = vmatprep.subr.mxu0 0.0
    %462 = vmatpush1.msra.mxu0 %v194
    %463 = vmatprep.subr.mxu0 0.0
    %464 = vmatpush1.msra.mxu0 %v199
    %465 = vmatprep.subr.mxu0 0.0
    %466 = vmatpush1.msra.mxu0 0.0
    %467 = vmatprep.subr.mxu0 0.0
    %468 = vmatpush1.msra.mxu0 0.0
    %469 = vmatprep.subr.mxu0 0.0
    %470 = vmatpush1.msra.mxu0 0.0
    %471 = vmatprep.subr.mxu0 0.0
    %472 = vmatpush1.msra.mxu0 0.0
    %473 = vmatprep.subr.mxu0 0.0
    %474 = vmatpush1.msra.mxu0 0.0
    %475 = vmatprep.subr.mxu0 0.0
    %476 = vmatpush1.msra.mxu0 0.0
    %477 = vmatprep.subr.mxu0 0.0
    %478 = vmatpush1.msra.mxu0 0.0
    %479 = vmatprep.subr.mxu0 0.0
    %480 = vmatpush1.msra.mxu0 0.0
    %481 = vmatprep.subr.mxu0 0.0
    %482 = vmatpush1.msra.mxu0 0.0
    %483 = vmatprep.subr.mxu0 0.0
    %484 = vmatpush1.msra.mxu0 0.0
    %485 = vmatprep.subr.mxu0 0.0
    %486 = vmatpush1.msra.mxu0 0.0
    %487 = vmatprep.subr.mxu0 0.0
    %488 = vmatpush1.msra.mxu0 0.0
    %489 = vmatprep.subr.mxu0 0.0
    %490 = vmatpush1.msra.mxu0 0.0
    %491 = vmatprep.subr.mxu0 0.0
    %492 = vmatpush1.msra.mxu0 0.0
    %493 = vmatprep.subr.mxu0 0.0
    %494 = vmatpush1.msra.mxu0 0.0
    %495 = vmatprep.subr.mxu0 0.0
    %496 = vmatpush1.msra.mxu0 0.0
    %497 = vmatprep.subr.mxu0 0.0
    %498 = vmatpush1.msra.mxu0 0.0
    %499 = vmatprep.subr.mxu0 0.0
    %500 = vmatpush1.msra.mxu0 0.0
    %501 = vmatprep.subr.mxu0 0.0
    %502 = vmatpush1.msra.mxu0 0.0
    %503 = vmatprep.subr.mxu0 0.0
    %504 = vmatpush1.msra.mxu0 0.0
    %505 = vmatprep.subr.mxu0 0.0
    %506 = vmatpush1.msra.mxu0 0.0
    %507 = vmatprep.subr.mxu0 0.0
    %508 = vmatpush1.msra.mxu0 0.0
    %509 = vmatprep.subr.mxu0 0.0
    %510 = vmatpush1.msra.mxu0 0.0
    %511 = vmatprep.subr.mxu0 0.0
    %512 = vmatpush1.msra.mxu0 0.0
    %513 = vmatprep.subr.mxu0 0.0
    %514 = vmatpush1.msra.mxu0 0.0
    %515 = vmatprep.subr.mxu0 0.0
    %516 = vmatpush1.msra.mxu0 0.0
    %517 = vmatprep.subr.mxu0 0.0
    %518 = vmatpush1.msra.mxu0 0.0
    %519 = vmatprep.subr.mxu0 0.0
    %520 = vmatpush1.msra.mxu0 0.0
    %521 = vmatprep.subr.mxu0 0.0
    %522 = vmatpush1.msra.mxu0 0.0
    %523 = vmatprep.subr.mxu0 0.0
    %524 = vmatpush1.msra.mxu0 0.0
    %525 = vmatprep.mubr.f32.mxu0 0.0
    %526 = vmatmul.mubr.f32.gmra.mrb[0].mxu0 %v243
    %v527 = vpop.f32.mrb[0].mxu0
    %v528 = vadd.f32 0.0, %v527
    %v529 = vpop.f32.mrb[0].mxu0
    %530 = vdwg.mxu0
    %s531 = scalar_lea.vmem [#allocation5], 24
    %532 = vst.msk [vmem:[%s531] sm:$0xff] %vm315, %v528
    %533 = vmatprep.subr.mxu0 0.0
    %534 = vmatpush1.msra.mxu0 %v204
    %535 = vmatprep.subr.mxu0 0.0
    %536 = vmatpush1.msra.mxu0 %v209
    %537 = vmatprep.subr.mxu0 0.0
    %538 = vmatpush1.msra.mxu0 0.0
    %539 = vmatprep.subr.mxu0 0.0
    %540 = vmatpush1.msra.mxu0 0.0
    %541 = vmatprep.subr.mxu0 0.0
    %542 = vmatpush1.msra.mxu0 0.0
    %543 = vmatprep.subr.mxu0 0.0
    %544 = vmatpush1.msra.mxu0 0.0
    %545 = vmatprep.subr.mxu0 0.0
    %546 = vmatpush1.msra.mxu0 0.0
    %547 = vmatprep.subr.mxu0 0.0
    %548 = vmatpush1.msra.mxu0 0.0
    %549 = vmatprep.subr.mxu0 0.0
    %550 = vmatpush1.msra.mxu0 0.0
    %551 = vmatprep.subr.mxu0 0.0
    %552 = vmatpush1.msra.mxu0 0.0
    %553 = vmatprep.subr.mxu0 0.0
    %554 = vmatpush1.msra.mxu0 0.0
    %555 = vmatprep.subr.mxu0 0.0
    %556 = vmatpush1.msra.mxu0 0.0
    %557 = vmatprep.subr.mxu0 0.0
    %558 = vmatpush1.msra.mxu0 0.0
    %559 = vmatprep.subr.mxu0 0.0
    %560 = vmatpush1.msra.mxu0 0.0
    %561 = vmatprep.subr.mxu0 0.0
    %562 = vmatpush1.msra.mxu0 0.0
    %563 = vmatprep.subr.mxu0 0.0
    %564 = vmatpush1.msra.mxu0 0.0
    %565 = vmatprep.subr.mxu0 0.0
    %566 = vmatpush1.msra.mxu0 0.0
    %567 = vmatprep.subr.mxu0 0.0
    %568 = vmatpush1.msra.mxu0 0.0
    %569 = vmatprep.subr.mxu0 0.0
    %570 = vmatpush1.msra.mxu0 0.0
    %571 = vmatprep.subr.mxu0 0.0
    %572 = vmatpush1.msra.mxu0 0.0
    %573 = vmatprep.subr.mxu0 0.0
    %574 = vmatpush1.msra.mxu0 0.0
    %575 = vmatprep.subr.mxu0 0.0
    %576 = vmatpush1.msra.mxu0 0.0
    %577 = vmatprep.subr.mxu0 0.0
    %578 = vmatpush1.msra.mxu0 0.0
    %579 = vmatprep.subr.mxu0 0.0
    %580 = vmatpush1.msra.mxu0 0.0
    %581 = vmatprep.subr.mxu0 0.0
    %582 = vmatpush1.msra.mxu0 0.0
    %583 = vmatprep.subr.mxu0 0.0
    %584 = vmatpush1.msra.mxu0 0.0
    %585 = vmatprep.subr.mxu0 0.0
    %586 = vmatpush1.msra.mxu0 0.0
    %587 = vmatprep.subr.mxu0 0.0
    %588 = vmatpush1.msra.mxu0 0.0
    %589 = vmatprep.subr.mxu0 0.0
    %590 = vmatpush1.msra.mxu0 0.0
    %591 = vmatprep.subr.mxu0 0.0
    %592 = vmatpush1.msra.mxu0 0.0
    %593 = vmatprep.subr.mxu0 0.0
    %594 = vmatpush1.msra.mxu0 0.0
    %595 = vmatprep.subr.mxu0 0.0
    %596 = vmatpush1.msra.mxu0 0.0
    %597 = vmatprep.mubr.f32.mxu0 0.0
    %598 = vmatmul.mubr.f32.gmra.mrb[0].mxu0 %v243
    %v599 = vpop.f32.mrb[0].mxu0
    %v600 = vadd.f32 0.0, %v599
    %v601 = vpop.f32.mrb[0].mxu0
    %602 = vdwg.mxu0
    %s603 = scalar_lea.vmem [#allocation5], 32
    %604 = vst.msk [vmem:[%s603] sm:$0xff] %vm315, %v600
    %605 = vmatprep.subr.mxu0 0.0
    %606 = vmatpush1.msra.mxu0 %v214
    %607 = vmatprep.subr.mxu0 0.0
    %608 = vmatpush1.msra.mxu0 %v219
    %609 = vmatprep.subr.mxu0 0.0
    %610 = vmatpush1.msra.mxu0 0.0
    %611 = vmatprep.subr.mxu0 0.0
    %612 = vmatpush1.msra.mxu0 0.0
    %613 = vmatprep.subr.mxu0 0.0
    %614 = vmatpush1.msra.mxu0 0.0
    %615 = vmatprep.subr.mxu0 0.0
    %616 = vmatpush1.msra.mxu0 0.0
    %617 = vmatprep.subr.mxu0 0.0
    %618 = vmatpush1.msra.mxu0 0.0
    %619 = vmatprep.subr.mxu0 0.0
    %620 = vmatpush1.msra.mxu0 0.0
    %621 = vmatprep.subr.mxu0 0.0
    %622 = vmatpush1.msra.mxu0 0.0
    %623 = vmatprep.subr.mxu0 0.0
    %624 = vmatpush1.msra.mxu0 0.0
    %625 = vmatprep.subr.mxu0 0.0
    %626 = vmatpush1.msra.mxu0 0.0
    %627 = vmatprep.subr.mxu0 0.0
    %628 = vmatpush1.msra.mxu0 0.0
    %629 = vmatprep.subr.mxu0 0.0
    %630 = vmatpush1.msra.mxu0 0.0
    %631 = vmatprep.subr.mxu0 0.0
    %632 = vmatpush1.msra.mxu0 0.0
    %633 = vmatprep.subr.mxu0 0.0
    %634 = vmatpush1.msra.mxu0 0.0
    %635 = vmatprep.subr.mxu0 0.0
    %636 = vmatpush1.msra.mxu0 0.0
    %637 = vmatprep.subr.mxu0 0.0
    %638 = vmatpush1.msra.mxu0 0.0
    %639 = vmatprep.subr.mxu0 0.0
    %640 = vmatpush1.msra.mxu0 0.0
    %641 = vmatprep.subr.mxu0 0.0
    %642 = vmatpush1.msra.mxu0 0.0
    %643 = vmatprep.subr.mxu0 0.0
    %644 = vmatpush1.msra.mxu0 0.0
    %645 = vmatprep.subr.mxu0 0.0
    %646 = vmatpush1.msra.mxu0 0.0
    %647 = vmatprep.subr.mxu0 0.0
    %648 = vmatpush1.msra.mxu0 0.0
    %649 = vmatprep.subr.mxu0 0.0
    %650 = vmatpush1.msra.mxu0 0.0
    %651 = vmatprep.subr.mxu0 0.0
    %652 = vmatpush1.msra.mxu0 0.0
    %653 = vmatprep.subr.mxu0 0.0
    %654 = vmatpush1.msra.mxu0 0.0
    %655 = vmatprep.subr.mxu0 0.0
    %656 = vmatpush1.msra.mxu0 0.0
    %657 = vmatprep.subr.mxu0 0.0
    %658 = vmatpush1.msra.mxu0 0.0
    %659 = vmatprep.subr.mxu0 0.0
    %660 = vmatpush1.msra.mxu0 0.0
    %661 = vmatprep.subr.mxu0 0.0
    %662 = vmatpush1.msra.mxu0 0.0
    %663 = vmatprep.subr.mxu0 0.0
    %664 = vmatpush1.msra.mxu0 0.0
    %665 = vmatprep.subr.mxu0 0.0
    %666 = vmatpush1.msra.mxu0 0.0
    %667 = vmatprep.subr.mxu0 0.0
    %668 = vmatpush1.msra.mxu0 0.0
    %669 = vmatprep.mubr.f32.mxu0 0.0
    %670 = vmatmul.mubr.f32.gmra.mrb[0].mxu0 %v243
    %v671 = vpop.f32.mrb[0].mxu0
    %v672 = vadd.f32 0.0, %v671
    %v673 = vpop.f32.mrb[0].mxu0
    %674 = vdwg.mxu0
    %s675 = scalar_lea.vmem [#allocation5], 40
    %676 = vst.msk [vmem:[%s675] sm:$0xff] %vm315, %v672
    %677 = vmatprep.subr.mxu0 0.0
    %678 = vmatpush1.msra.mxu0 %v224
    %679 = vmatprep.subr.mxu0 0.0
    %680 = vmatpush1.msra.mxu0 %v229
    %681 = vmatprep.subr.mxu0 0.0
    %682 = vmatpush1.msra.mxu0 0.0
    %683 = vmatprep.subr.mxu0 0.0
    %684 = vmatpush1.msra.mxu0 0.0
    %685 = vmatprep.subr.mxu0 0.0
    %686 = vmatpush1.msra.mxu0 0.0
    %687 = vmatprep.subr.mxu0 0.0
    %688 = vmatpush1.msra.mxu0 0.0
    %689 = vmatprep.subr.mxu0 0.0
    %690 = vmatpush1.msra.mxu0 0.0
    %691 = vmatprep.subr.mxu0 0.0
    %692 = vmatpush1.msra.mxu0 0.0
    %693 = vmatprep.subr.mxu0 0.0
    %694 = vmatpush1.msra.mxu0 0.0
    %695 = vmatprep.subr.mxu0 0.0
    %696 = vmatpush1.msra.mxu0 0.0
    %697 = vmatprep.subr.mxu0 0.0
    %698 = vmatpush1.msra.mxu0 0.0
    %699 = vmatprep.subr.mxu0 0.0
    %700 = vmatpush1.msra.mxu0 0.0
    %701 = vmatprep.subr.mxu0 0.0
    %702 = vmatpush1.msra.mxu0 0.0
    %703 = vmatprep.subr.mxu0 0.0
    %704 = vmatpush1.msra.mxu0 0.0
    %705 = vmatprep.subr.mxu0 0.0
    %706 = vmatpush1.msra.mxu0 0.0
    %707 = vmatprep.subr.mxu0 0.0
    %708 = vmatpush1.msra.mxu0 0.0
    %709 = vmatprep.subr.mxu0 0.0
    %710 = vmatpush1.msra.mxu0 0.0
    %711 = vmatprep.subr.mxu0 0.0
    %712 = vmatpush1.msra.mxu0 0.0
    %713 = vmatprep.subr.mxu0 0.0
    %714 = vmatpush1.msra.mxu0 0.0
    %715 = vmatprep.subr.mxu0 0.0
    %716 = vmatpush1.msra.mxu0 0.0
    %717 = vmatprep.subr.mxu0 0.0
    %718 = vmatpush1.msra.mxu0 0.0
    %719 = vmatprep.subr.mxu0 0.0
    %720 = vmatpush1.msra.mxu0 0.0
    %721 = vmatprep.subr.mxu0 0.0
    %722 = vmatpush1.msra.mxu0 0.0
    %723 = vmatprep.subr.mxu0 0.0
    %724 = vmatpush1.msra.mxu0 0.0
    %725 = vmatprep.subr.mxu0 0.0
    %726 = vmatpush1.msra.mxu0 0.0
    %727 = vmatprep.subr.mxu0 0.0
    %728 = vmatpush1.msra.mxu0 0.0
    %729 = vmatprep.subr.mxu0 0.0
    %730 = vmatpush1.msra.mxu0 0.0
    %731 = vmatprep.subr.mxu0 0.0
    %732 = vmatpush1.msra.mxu0 0.0
    %733 = vmatprep.subr.mxu0 0.0
    %734 = vmatpush1.msra.mxu0 0.0
    %735 = vmatprep.subr.mxu0 0.0
    %736 = vmatpush1.msra.mxu0 0.0
    %737 = vmatprep.subr.mxu0 0.0
    %738 = vmatpush1.msra.mxu0 0.0
    %739 = vmatprep.subr.mxu0 0.0
    %740 = vmatpush1.msra.mxu0 0.0
    %741 = vmatprep.mubr.f32.mxu0 0.0
    %742 = vmatmul.mubr.f32.gmra.mrb[0].mxu0 %v243
    %v743 = vpop.f32.mrb[0].mxu0
    %v744 = vadd.f32 0.0, %v743
    %v745 = vpop.f32.mrb[0].mxu0
    %746 = vdwg.mxu0
    %s747 = scalar_lea.vmem [#allocation5], 48
    %748 = vst.msk [vmem:[%s747] sm:$0xff] %vm315, %v744
    %749 = vmatprep.subr.mxu0 0.0
    %750 = vmatpush1.msra.mxu0 %v234
    %751 = vmatprep.subr.mxu0 0.0
    %752 = vmatpush1.msra.mxu0 %v239
    %753 = vmatprep.subr.mxu0 0.0
    %754 = vmatpush1.msra.mxu0 0.0
    %755 = vmatprep.subr.mxu0 0.0
    %756 = vmatpush1.msra.mxu0 0.0
    %757 = vmatprep.subr.mxu0 0.0
    %758 = vmatpush1.msra.mxu0 0.0
    %759 = vmatprep.subr.mxu0 0.0
    %760 = vmatpush1.msra.mxu0 0.0
    %761 = vmatprep.subr.mxu0 0.0
    %762 = vmatpush1.msra.mxu0 0.0
    %763 = vmatprep.subr.mxu0 0.0
    %764 = vmatpush1.msra.mxu0 0.0
    %765 = vmatprep.subr.mxu0 0.0
    %766 = vmatpush1.msra.mxu0 0.0
    %767 = vmatprep.subr.mxu0 0.0
    %768 = vmatpush1.msra.mxu0 0.0
    %769 = vmatprep.subr.mxu0 0.0
    %770 = vmatpush1.msra.mxu0 0.0
    %771 = vmatprep.subr.mxu0 0.0
    %772 = vmatpush1.msra.mxu0 0.0
    %773 = vmatprep.subr.mxu0 0.0
    %774 = vmatpush1.msra.mxu0 0.0
    %775 = vmatprep.subr.mxu0 0.0
    %776 = vmatpush1.msra.mxu0 0.0
    %777 = vmatprep.subr.mxu0 0.0
    %778 = vmatpush1.msra.mxu0 0.0
    %779 = vmatprep.subr.mxu0 0.0
    %780 = vmatpush1.msra.mxu0 0.0
    %781 = vmatprep.subr.mxu0 0.0
    %782 = vmatpush1.msra.mxu0 0.0
    %783 = vmatprep.subr.mxu0 0.0
    %784 = vmatpush1.msra.mxu0 0.0
    %785 = vmatprep.subr.mxu0 0.0
    %786 = vmatpush1.msra.mxu0 0.0
    %787 = vmatprep.subr.mxu0 0.0
    %788 = vmatpush1.msra.mxu0 0.0
    %789 = vmatprep.subr.mxu0 0.0
    %790 = vmatpush1.msra.mxu0 0.0
    %791 = vmatprep.subr.mxu0 0.0
    %792 = vmatpush1.msra.mxu0 0.0
    %793 = vmatprep.subr.mxu0 0.0
    %794 = vmatpush1.msra.mxu0 0.0
    %795 = vmatprep.subr.mxu0 0.0
    %796 = vmatpush1.msra.mxu0 0.0
    %797 = vmatprep.subr.mxu0 0.0
    %798 = vmatpush1.msra.mxu0 0.0
    %799 = vmatprep.subr.mxu0 0.0
    %800 = vmatpush1.msra.mxu0 0.0
    %801 = vmatprep.subr.mxu0 0.0
    %802 = vmatpush1.msra.mxu0 0.0
    %803 = vmatprep.subr.mxu0 0.0
    %804 = vmatpush1.msra.mxu0 0.0
    %805 = vmatprep.subr.mxu0 0.0
    %806 = vmatpush1.msra.mxu0 0.0
    %807 = vmatprep.subr.mxu0 0.0
    %808 = vmatpush1.msra.mxu0 0.0
    %809 = vmatprep.subr.mxu0 0.0
    %810 = vmatpush1.msra.mxu0 0.0
    %811 = vmatprep.subr.mxu0 0.0
    %812 = vmatpush1.msra.mxu0 0.0
    %813 = vmatprep.mubr.f32.mxu0 0.0
    %814 = vmatmul.mubr.f32.gmra.mrb[0].mxu0 %v243
    %v815 = vpop.f32.mrb[0].mxu0
    %v816 = vadd.f32 0.0, %v815
    %v817 = vpop.f32.mrb[0].mxu0
    %818 = vdwg.mxu0
    %s819 = scalar_lea.vmem [#allocation5], 56
    %820 = vst.msk [vmem:[%s819] sm:$0xff] %vm315, %v816
    // Predicated region
    $region18: #{tpu_custom_call.1} parent=1 // pred_check
      _
    $region19: #{tpu_custom_call.1} parent=1 // pred_check_branch
      %822 = sbr.rel (0) target = $region21
    $region20: #{tpu_custom_call.1} parent=1 // pred_region
      %s824 = ssub.s32 1024, 1024
      %825 = vsyncadd [#allocation4], %s824
      %s826 = sshll.u32 [#allocation5], 4
      %s827 = int_to_ptr.vmem [resolvable:$true] %s826
      %832 = dma.vmem_to_hbm [thread:$0]  %s827, 1024, %s3, [#allocation4], 128, 128, 8
    $region21: #{tpu_custom_call.1} parent=1 // pred_fallthru
      _
    // Predicated region
    $region22: #{tpu_custom_call.1} parent=1 // pred_check
      _
    $region23: #{tpu_custom_call.1} parent=1 // pred_check_branch
      %834 = sbr.rel (0) target = $region25
    $region24: #{tpu_custom_call.1} parent=1 // pred_region
      %835 = dma.done [#allocation4], 1024
    $region25: #{tpu_custom_call.1} parent=1 // pred_fallthru
      _
    %836 = vsyncpa [#allocation3], 1
    %837 = vsyncpa [#allocation4], 1

</llo_original>
